<compile_context>
chip_gen: v5e
topology: v5e:2x2
jax: 0.10.0
libtpu: 0.0.40
codegen_flags: <defaults>
</compile_context>

<pallas_src>
import math

import jax
import jax.numpy as jnp
from jax.experimental import pallas as pl
from jax.experimental.pallas import tpu as pltpu


def _round_up(x, m):
    return ((x + m - 1) // m) * m


def _patch_embed_kernel(x_ref, w_ref, b_ref, o_ref):
    # x_ref: (TM, Kp) compute dtype (bf16/f32)   flattened-patch tile (streamed)
    # w_ref: (Kp, Ep) compute dtype              projection weight (resident)
    # b_ref: (1, Ep)  float32                    bias (resident)
    # o_ref: (TM, Ep) output dtype
    acc = jnp.dot(x_ref[...], w_ref[...], preferred_element_type=jnp.float32)
    o_ref[...] = (acc + b_ref[...]).astype(o_ref.dtype)


def _vmem_capacity_bytes():
    try:
        return int(pltpu.get_tpu_info().vmem_capacity_bytes)
    except Exception:
        return 64 * 1024 * 1024  # conservative fallback (v7x per-TC VMEM)


def patch_embedding(x_nchw, weight, bias, patch_size, *,
                    compute_dtype=jnp.bfloat16,
                    out_dtype=None,
                    tile_m=4096,
                    vmem_limit_bytes=None):
    """Pallas PatchEmbedding forward.

    Args:
      x_nchw: (B, C, H, W), PyTorch NCHW layout.
      weight: (E, C, P, P) (same layout as nn.Conv2d.weight).
      bias:   (E,).
      patch_size: int P, kernel_size == stride == P.
      compute_dtype: dtype of streamed matmul operands (bf16 -> MXU rate;
        accumulation and bias add are always f32).
      out_dtype: output dtype; default x.dtype.  Pass bf16 when downstream
        accepts it to halve writeback bytes / output VMEM.
      tile_m: upper bound on the M tile; shrunk to fit the VMEM budget.

    Returns:
      (B, num_patches, E), matching proj(x).flatten(2).transpose(1, 2).
    """
    B, C, H, W = x_nchw.shape
    E = weight.shape[0]
    P = patch_size
    Hp, Wp = H // P, W // P
    num_patches = Hp * Wp
    K = C * P * P
    M = B * num_patches
    if out_dtype is None:
        out_dtype = x_nchw.dtype

    # Lane-dense padded contraction / embed dims (multiples of 128).
    Kp = _round_up(K, 128)
    Ep = _round_up(E, 128)

    # --- patch extraction: standalone XLA transpose (explicitly materialized
    # contiguous (M, Kp) operand; the kernel DMA then streams contiguous rows).
    # (B, C, Hp, P, Wp, P) -> (B, Hp, Wp, C, P, P) -> (M, K)
    patches = x_nchw.astype(compute_dtype)
    patches = patches.reshape(B, C, Hp, P, Wp, P)
    patches = jnp.transpose(patches, (0, 2, 4, 1, 3, 5))
    patches = patches.reshape(M, K)
    if Kp != K:
        patches = jnp.pad(patches, ((0, 0), (0, Kp - K)))  # K pad only; no M pad

    # weight (E, C, P, P) -> (K, E) in the same (c, ph, pw) order, padded.
    w_mat = weight.reshape(E, K).T.astype(compute_dtype)
    if Kp != K or Ep != E:
        w_mat = jnp.pad(w_mat, ((0, Kp - K), (0, Ep - E)))
    b_mat = bias.astype(jnp.float32).reshape(1, E)
    if Ep != E:
        b_mat = jnp.pad(b_mat, ((0, 0), (0, Ep - E)))

    in_b = jnp.dtype(compute_dtype).itemsize
    out_b = jnp.dtype(out_dtype).itemsize

    # --- generation-aware VMEM budget ------------------------------------
    vmem_cap = _vmem_capacity_bytes()               # 128 MiB v5e/v6e, 64 MiB v7x
    if vmem_limit_bytes is None:
        vmem_limit_bytes = min(int(0.85 * vmem_cap), vmem_cap - 8 * 1024 * 1024)
    vmem_limit_bytes = int(vmem_limit_bytes)
    # Keep >= 16 MiB headroom below the scoped limit for internal scratch.
    budget = max(vmem_limit_bytes - 16 * 1024 * 1024, 8 * 1024 * 1024)

    def _vmem_bytes(tm):
        return (2 * tm * Kp * in_b        # patch tile, double-buffered
                + 2 * tm * Ep * out_b     # output tile, double-buffered
                + 2 * Kp * Ep * in_b      # resident weight (2 buffers allocated)
                + 2 * Ep * 4              # resident bias
                + tm * Ep * 4)            # Mosaic f32 staging of the dot result

    TM = max(8, (int(tile_m) // 8) * 8)
    while TM > 256 and _vmem_bytes(TM) > budget:
        TM //= 2

    # Keep several M-grid steps (>= 2 per TensorCore on v7x + pipelining),
    # as long as tiles stay MXU-sized.
    for target_steps in (8, 4, 2):
        cap = (M // target_steps) // 8 * 8
        if cap >= 512:
            TM = min(TM, cap)
            break

    if M <= TM:
        TM = M                            # single full tile (block == full dim)
    grid = (pl.cdiv(M, TM),)              # ragged last tile; no M padding

    bytes_accessed = (M * Kp * in_b + Kp * Ep * in_b + Ep * 4 + M * Ep * out_b)

    out_flat = pl.pallas_call(
        _patch_embed_kernel,
        out_shape=jax.ShapeDtypeStruct((M, Ep), out_dtype),
        grid_spec=pltpu.PrefetchScalarGridSpec(
            num_scalar_prefetch=0,
            grid=grid,
            in_specs=[
                pl.BlockSpec((TM, Kp), lambda i: (i, 0)),   # patches: stream M
                pl.BlockSpec((Kp, Ep), lambda i: (0, 0)),   # weight: resident
                pl.BlockSpec((1, Ep), lambda i: (0, 0)),    # bias: resident
            ],
            out_specs=pl.BlockSpec((TM, Ep), lambda i: (i, 0)),
        ),
        compiler_params=pltpu.CompilerParams(
            dimension_semantics=("parallel",),              # shard M over TCs
            vmem_limit_bytes=vmem_limit_bytes,
        ),
        cost_estimate=pl.CostEstimate(
            flops=2 * M * Kp * Ep,
            transcendentals=0,
            bytes_accessed=bytes_accessed,
        ),
    )(patches, w_mat, b_mat)

    # Strip E padding and restore (B, num_patches, E).
    if Ep != E:
        out_flat = out_flat[:, :E]
    return out_flat.reshape(B, num_patches, E)


if __name__ == "__main__":
    # Small shapes consistent with the module.
    img_size = 16
    patch_size = 4
    in_channels = 4
    embed_dim = 32
    batch = 2

    key = jax.random.PRNGKey(0)
    kx, kw, kb = jax.random.split(key, 3)

    # Deterministic parameter init (nn.Conv2d-style kaiming-uniform bounds).
    fan_in = in_channels * patch_size * patch_size
    bound = math.sqrt(1.0 / fan_in)
    weight = jax.random.uniform(
        kw, (embed_dim, in_channels, patch_size, patch_size),
        dtype=jnp.float32, minval=-bound, maxval=bound)
    bias = jax.random.uniform(
        kb, (embed_dim,), dtype=jnp.float32, minval=-bound, maxval=bound)
    x = jax.random.normal(
        kx, (batch, in_channels, img_size, img_size), dtype=jnp.float32)

    # Reference: nn.Conv2d forward + flatten(2).transpose(1, 2).
    ref = jax.lax.conv_general_dilated(
        x, weight, window_strides=(patch_size, patch_size), padding="VALID",
        dimension_numbers=("NCHW", "OIHW", "NCHW"))
    ref = ref + bias.reshape(1, embed_dim, 1, 1)
    ref = ref.reshape(batch, embed_dim, -1).transpose(0, 2, 1)

    num_patches = (img_size // patch_size) ** 2

    # Exact path (f32 operands): tight check against the conv reference.
    out_f32 = jax.block_until_ready(
        patch_embedding(x, weight, bias, patch_size, compute_dtype=jnp.float32))
    assert out_f32.shape == (batch, num_patches, embed_dim)
    assert jnp.allclose(out_f32, ref, atol=1e-5, rtol=1e-5)

    # Fast path (bf16 operands, f32 accumulation / output): loosened tolerance.
    out_bf16 = jax.block_until_ready(
        patch_embedding(x, weight, bias, patch_size, compute_dtype=jnp.bfloat16))
    assert out_bf16.shape == (batch, num_patches, embed_dim)
    assert jnp.allclose(out_bf16, ref, atol=3e-2, rtol=3e-2)

    # bf16 output path (halves writeback bytes; useful on v5e / as VMEM saver).
    out_bf16_out = jax.block_until_ready(
        patch_embedding(x, weight, bias, patch_size,
                        compute_dtype=jnp.bfloat16, out_dtype=jnp.bfloat16))
    assert out_bf16_out.shape == (batch, num_patches, embed_dim)
    assert out_bf16_out.dtype == jnp.bfloat16
    assert jnp.allclose(out_bf16_out.astype(jnp.float32), ref, atol=5e-2, rtol=5e-2)

    print("KERNEL_OK")
</pallas_src>

<mosaic_0001>
module attributes {stable_mosaic.version = 11 : i64} {
  func.func @_patch_embed_kernel(%arg0: i32, %arg1: memref<32x128xf32, #tpu.memory_space<vmem>>, %arg2: memref<128x128xf32, #tpu.memory_space<vmem>>, %arg3: memref<1x128xf32, #tpu.memory_space<vmem>>, %arg4: memref<32x128xf32, #tpu.memory_space<vmem>>) attributes {dimension_semantics = [#tpu.dimension_semantics<parallel>], iteration_bounds = array<i64: 1>, scalar_prefetch = 0 : i64, scratch_operands = 0 : i64, tpu.core_type = #tpu.core_type<tc>, window_params = [{transform_indices = @transform_0, window_bounds = array<i64: 32, 128>}, {pipeline_mode = #tpu.pipeline_mode<synchronous>, transform_indices = @transform_1, window_bounds = array<i64: 128, 128>}, {pipeline_mode = #tpu.pipeline_mode<synchronous>, transform_indices = @transform_2, window_bounds = array<i64: 1, 128>}, {transform_indices = @transform_3, window_bounds = array<i64: 32, 128>}]} {
    %c0 = arith.constant 0 : index
    %c0_0 = arith.constant 0 : index
    %0 = vector.load %arg1[%c0, %c0_0] : memref<32x128xf32, #tpu.memory_space<vmem>>, vector<32x128xf32>
    %c0_1 = arith.constant 0 : index
    %c0_2 = arith.constant 0 : index
    %1 = vector.load %arg2[%c0_1, %c0_2] : memref<128x128xf32, #tpu.memory_space<vmem>>, vector<128x128xf32>
    %cst = arith.constant dense<0.000000e+00> : vector<32x128xf32>
    %2 = tpu.matmul %0, %1, %cst {dimension_numbers = #tpu.dot_dimension_numbers<[1], [0], [0], [1], [0, 0, 1, 1], [], []>} : vector<32x128xf32>, vector<128x128xf32>, vector<32x128xf32> -> vector<32x128xf32>
    %c0_3 = arith.constant 0 : index
    %c0_4 = arith.constant 0 : index
    %3 = vector.load %arg3[%c0_3, %c0_4] : memref<1x128xf32, #tpu.memory_space<vmem>>, vector<1x128xf32>
    %4 = vector.broadcast %3 : vector<1x128xf32> to vector<32x128xf32>
    %5 = arith.addf %2, %4 : vector<32x128xf32>
    %c0_5 = arith.constant 0 : index
    %c0_6 = arith.constant 0 : index
    %6 = vector.load %arg4[%c0_5, %c0_6] : memref<32x128xf32, #tpu.memory_space<vmem>>, vector<32x128xf32>
    tpu.vector_store %arg4[%c0_5, %c0_6], %5 {strides = array<i32>} : memref<32x128xf32, #tpu.memory_space<vmem>>, vector<32x128xf32>,
    return
  }
  func.func @transform_0(%arg0: i32) -> (i32, i32) {
    %c0_i32 = arith.constant 0 : i32
    %c0_i32_0 = arith.constant 0 : i32
    return %arg0, %c0_i32 : i32, i32
  }
  func.func @transform_1(%arg0: i32) -> (i32, i32) {
    %c0_i32 = arith.constant 0 : i32
    %c0_i32_0 = arith.constant 0 : i32
    %c0_i32_1 = arith.constant 0 : i32
    return %c0_i32, %c0_i32_0 : i32, i32
  }
  func.func @transform_2(%arg0: i32) -> (i32, i32) {
    %c0_i32 = arith.constant 0 : i32
    %c0_i32_0 = arith.constant 0 : i32
    %c0_i32_1 = arith.constant 0 : i32
    return %c0_i32, %c0_i32_0 : i32, i32
  }
  func.func @transform_3(%arg0: i32) -> (i32, i32) {
    %c0_i32 = arith.constant 0 : i32
    %c0_i32_0 = arith.constant 0 : i32
    return %arg0, %c0_i32 : i32, i32
  }
}

</mosaic_0001>

<llo_original>
// kernel: tpu_custom_call.1
$region0: #{tpu_custom_call.1}
  #allocation0 [shape = 'u32[]', space=smem, size = 0x4, offset = 0x4, fixed_abs, tag = 'smem constant byte address 0x4 - core index']
  #allocation1 [shape = 'u32[72,128]{1,0:T(1,128)}', space=vmem, size = 0x9000, scoped, tag = 'internal scratch']
  %s0 = inlined_call_operand.hbm [shape: f32[32,128], index: 0, kind: input, shape index: {}]
  %s1 = inlined_call_operand.hbm [shape: f32[128,128], index: 1, kind: input, shape index: {}]
  %s2 = inlined_call_operand.vmem [shape: f32[1,128], index: 2, kind: input, shape index: {}]
  %s3 = inlined_call_operand.hbm [shape: f32[32,128], index: 3, kind: output, shape index: {}]
  %s4 = sld [smem:[#allocation0]]
  $region30: #{tpu_custom_call.1} parent=0
    _
  %s6 = ssub.s32 1, %s4
  %s7 = scalar_select 0, %s6, %s4
  $region1: #{tpu_custom_call.1} parent=0
    #allocation2 [shape = 'u8[16384]{0}', space=vmem, size = 0x4000, scoped, tag = 'input window, operand 0, single buffered']
    #allocation3 [shape = 's32[1]{0}', space=sflag, size = 0x4, scoped, tag = 'scoped memory for tpu_custom_call.1']
    #allocation4 [shape = 's32[1]{0}', space=sflag, size = 0x4, scoped, tag = 'scoped memory for tpu_custom_call.1']
    #allocation5 [shape = 'u8[65536]{0}', space=vmem, size = 0x10000, scoped, tag = 'input window, operand 1, single buffered']
    #allocation6 [shape = 's32[1]{0}', space=sflag, size = 0x4, scoped, tag = 'scoped memory for tpu_custom_call.1']
    #allocation7 [shape = 'u8[16384]{0}', space=vmem, size = 0x4000, scoped, tag = 'output window, operand 0, single buffered']
    %8 = vsyncpa [#allocation3], 0
    %9 = vsyncpa [#allocation6], 0
    %10 = vsyncpa [#allocation4], 0
    // Predicated region
    $region2: #{tpu_custom_call.1} parent=1 // pred_check
      _
    $region3: #{tpu_custom_call.1} parent=1 // pred_check_branch
      %12 = sbr.rel (0) target = $region5
    $region4: #{tpu_custom_call.1} parent=1 // pred_region
      %14 = vsyncadd [#allocation3], 0
      %s15 = sshll.u32 %s0, 4
      %s16 = int_to_ptr.hbm [resolvable:$true] %s15
      %s17 = sshll.u32 [#allocation2], 4
      %s18 = int_to_ptr.vmem [resolvable:$true] %s17
      %23 = dma.hbm_to_vmem [thread:$0]  %s16, 512, %s18, [#allocation3], 128, 128, 8
    $region5: #{tpu_custom_call.1} parent=1 // pred_fallthru
      _
    // Predicated region
    $region6: #{tpu_custom_call.1} parent=1 // pred_check
      _
    $region7: #{tpu_custom_call.1} parent=1 // pred_check_branch
      %25 = sbr.rel (0) target = $region9
    $region8: #{tpu_custom_call.1} parent=1 // pred_region
      %27 = vsyncadd [#allocation6], 0
      %s28 = sshll.u32 %s1, 4
      %s29 = int_to_ptr.hbm [resolvable:$true] %s28
      %s30 = sshll.u32 [#allocation5], 4
      %s31 = int_to_ptr.vmem [resolvable:$true] %s30
      %36 = dma.hbm_to_vmem [thread:$0]  %s29, 2048, %s31, [#allocation6], 128, 128, 8
    $region9: #{tpu_custom_call.1} parent=1 // pred_fallthru
      _
    // Predicated region
    $region10: #{tpu_custom_call.1} parent=1 // pred_check
      _
    $region11: #{tpu_custom_call.1} parent=1 // pred_check_branch
      %38 = sbr.rel (0) target = $region13
    $region12: #{tpu_custom_call.1} parent=1 // pred_region
      _
    $region13: #{tpu_custom_call.1} parent=1 // pred_fallthru
      _
    // Predicated region
    $region14: #{tpu_custom_call.1} parent=1 // pred_check
      _
    $region15: #{tpu_custom_call.1} parent=1 // pred_check_branch
      %40 = sbr.rel (0) target = $region17
    $region16: #{tpu_custom_call.1} parent=1 // pred_region
      %42 = dma.done [#allocation3], 512
    $region17: #{tpu_custom_call.1} parent=1 // pred_fallthru
      _
    // Predicated region
    $region18: #{tpu_custom_call.1} parent=1 // pred_check
      _
    $region19: #{tpu_custom_call.1} parent=1 // pred_check_branch
      %44 = sbr.rel (0) target = $region21
    $region20: #{tpu_custom_call.1} parent=1 // pred_region
      %46 = dma.done [#allocation6], 2048
    $region21: #{tpu_custom_call.1} parent=1 // pred_fallthru
      _
    %v47 = vld [vmem:[#allocation2] sm:$0xff]
    %v48 = vld [vmem:[#allocation2 + $0x8] sm:$0xff]
    %v49 = vld [vmem:[#allocation2 + $0x10] sm:$0xff]
    %v50 = vld [vmem:[#allocation2 + $0x18] sm:$0xff]
    %v51 = vld [vmem:[#allocation5] sm:$0xff]
    %v52 = vld [vmem:[#allocation5 + $0x8] sm:$0xff]
    %v53 = vld [vmem:[#allocation5 + $0x10] sm:$0xff]
    %v54 = vld [vmem:[#allocation5 + $0x18] sm:$0xff]
    %v55 = vld [vmem:[#allocation5 + $0x20] sm:$0xff]
    %v56 = vld [vmem:[#allocation5 + $0x28] sm:$0xff]
    %v57 = vld [vmem:[#allocation5 + $0x30] sm:$0xff]
    %v58 = vld [vmem:[#allocation5 + $0x38] sm:$0xff]
    %v59 = vld [vmem:[#allocation5 + $0x40] sm:$0xff]
    %v60 = vld [vmem:[#allocation5 + $0x48] sm:$0xff]
    %v61 = vld [vmem:[#allocation5 + $0x50] sm:$0xff]
    %v62 = vld [vmem:[#allocation5 + $0x58] sm:$0xff]
    %v63 = vld [vmem:[#allocation5 + $0x60] sm:$0xff]
    %v64 = vld [vmem:[#allocation5 + $0x68] sm:$0xff]
    %v65 = vld [vmem:[#allocation5 + $0x70] sm:$0xff]
    %v66 = vld [vmem:[#allocation5 + $0x78] sm:$0xff]
    %v67 = vld [vmem:[%s2] sm:$0x1]
    %v69 = vperm.slane %v67, 0
    %71 = vmatpush.msra.mxu0 %v66
    %72 = vmatpush.msra.mxu0 %v65
    %73 = vmatpush.msra.mxu0 %v64
    %74 = vmatpush.msra.mxu0 %v63
    %75 = vmatpush.msra.mxu0 %v62
    %76 = vmatpush.msra.mxu0 %v61
    %77 = vmatpush.msra.mxu0 %v60
    %78 = vmatpush.msra.mxu0 %v59
    %79 = vmatpush.msra.mxu0 %v58
    %80 = vmatpush.msra.mxu0 %v57
    %81 = vmatpush.msra.mxu0 %v56
    %82 = vmatpush.msra.mxu0 %v55
    %83 = vmatpush.msra.mxu0 %v54
    %84 = vmatpush.msra.mxu0 %v53
    %85 = vmatpush.msra.mxu0 %v52
    %86 = vmatpush.msra.mxu0 %v51
    %87 = vmatmul.f32.gmra.mxu0 %v47
    %v88 = vpop.f32.mrf.mxu0
    %v89 = vadd.f32 %v69, %v88
    %90 = vmatmul.f32.gmra.mxu0 %v48
    %v91 = vpop.f32.mrf.mxu0
    %v92 = vadd.f32 %v69, %v91
    %93 = vmatmul.f32.gmra.mxu0 %v49
    %v94 = vpop.f32.mrf.mxu0
    %v95 = vadd.f32 %v69, %v94
    %96 = vmatmul.f32.gmra.mxu0 %v50
    %v97 = vpop.f32.mrf.mxu0
    %v98 = vadd.f32 %v69, %v97
    %99 = vdwg.mxu0
    %100 = vst [vmem:[#allocation7] sm:$0xff] %v89
    %101 = vst [vmem:[#allocation7 + $0x8] sm:$0xff] %v92
    %102 = vst [vmem:[#allocation7 + $0x10] sm:$0xff] %v95
    %103 = vst [vmem:[#allocation7 + $0x18] sm:$0xff] %v98
    // Predicated region
    $region22: #{tpu_custom_call.1} parent=1 // pred_check
      _
    $region23: #{tpu_custom_call.1} parent=1 // pred_check_branch
      %105 = sbr.rel (0) target = $region25
    $region24: #{tpu_custom_call.1} parent=1 // pred_region
      %107 = vsyncadd [#allocation4], 0
      %s108 = sshll.u32 [#allocation7], 4
      %s109 = int_to_ptr.vmem [resolvable:$true] %s108
      %s110 = sshll.u32 %s3, 4
      %s111 = int_to_ptr.hbm [resolvable:$true] %s110
      %116 = dma.vmem_to_hbm [thread:$0]  %s109, 512, %s111, [#allocation4], 128, 128, 8
    $region25: #{tpu_custom_call.1} parent=1 // pred_fallthru
      _
    // Predicated region
    $region26: #{tpu_custom_call.1} parent=1 // pred_check
      _
    $region27: #{tpu_custom_call.1} parent=1 // pred_check_branch
      %118 = sbr.rel (0) target = $region29
    $region28: #{tpu_custom_call.1} parent=1 // pred_region
      %120 = dma.done [#allocation4], 512
    $region29: #{tpu_custom_call.1} parent=1 // pred_fallthru
      _
    %121 = vsyncpa [#allocation3], 1
    %122 = vsyncpa [#allocation6], 1
    %123 = vsyncpa [#allocation4], 1

</llo_original>
